<compile_context>
chip_gen: v5e
topology: v5e:2x2
jax: 0.10.0
libtpu: 0.0.40
codegen_flags: <defaults>
</compile_context>

<pallas_src>
import jax
import jax.numpy as jnp
from jax.experimental import pallas as pl
from jax.experimental.pallas import tpu as pltpu

_LANE = 128


def _round_up(x, m):
    return ((x + m - 1) // m) * m


def _box_predictor_kernel(x_ref, w_ref, b_ref, out_ref):
    """Fused FastRCNNPredictor head: one lane-dense MXU matmul + bias epilogue."""
    # x: (tile_r, F) f32 -> bf16 in-kernel; w: (F, N_pad) bf16; b: (1, N_pad) f32.
    x = x_ref[...].astype(jnp.bfloat16)
    acc = jnp.dot(x, w_ref[...], preferred_element_type=jnp.float32)
    out_ref[...] = (acc + b_ref[...]).astype(out_ref.dtype)


def fuse_box_predictor_params(w_cls, b_cls, w_bbox, b_bbox):
    """One-time parameter fusion (call at init, NOT per forward).

    w_cls  : [F, C]    b_cls  : [1, C]
    w_bbox : [F, 4*C]  b_bbox : [1, 4*C]

    Returns a dict with the pre-fused bf16 weight [F, N_pad], f32 bias
    [1, N_pad] and the lane-aligned layout offsets. Each head is padded to its
    own 128-lane boundary so both output slices are lane-dense.
    """
    F, C = w_cls.shape
    C4 = w_bbox.shape[1]
    c_pad = _round_up(C, _LANE)
    c4_pad = _round_up(C4, _LANE)
    n_pad = c_pad + c4_pad

    w = jnp.zeros((F, n_pad), jnp.float32)
    w = w.at[:, :C].set(w_cls.astype(jnp.float32))
    w = w.at[:, c_pad:c_pad + C4].set(w_bbox.astype(jnp.float32))

    b = jnp.zeros((1, n_pad), jnp.float32)
    b = b.at[:, :C].set(b_cls.astype(jnp.float32))
    b = b.at[:, c_pad:c_pad + C4].set(b_bbox.astype(jnp.float32))

    return {
        "w_fused": w.astype(jnp.bfloat16),   # [F, N_pad] bf16 (MXU input)
        "b_fused": b,                        # [1, N_pad] f32
        "F": F, "C": C, "C4": C4, "C_pad": c_pad, "N_pad": n_pad,
    }


def fast_rcnn_predictor(roi_feats, fused_params, *, tile_r=None,
                        out_dtype=jnp.float32):
    """Pallas FastRCNNPredictor forward.

    roi_feats    : [R, F] pooled ROI features, f32 (any R; ragged last tile OK)
    fused_params : dict from fuse_box_predictor_params (computed once)
    returns      : (scores [R, C], bbox_deltas [R, 4*C]) in out_dtype
    """
    R, F = roi_feats.shape
    assert F == fused_params["F"]
    C = fused_params["C"]
    C4 = fused_params["C4"]
    c_pad = fused_params["C_pad"]
    n_pad = fused_params["N_pad"]
    w_fused = fused_params["w_fused"]
    b_fused = fused_params["b_fused"]

    # --- Row tiling -------------------------------------------------------
    # Small R: single grid step, tile rounded to a multiple of 16 (bf16 vreg
    # sublane packing). Larger R: big tiles but >=2 steps so the "parallel"
    # grid axis can shard across v7x's two TensorCores.
    if tile_r is None:
        if R <= 256:
            tile_r = _round_up(max(R, 16), 16)
        elif R <= 1024:
            tile_r = 256
        else:
            tile_r = 512
    grid = (pl.cdiv(R, tile_r),)

    out_bytes = jnp.dtype(out_dtype).itemsize
    cost = pl.CostEstimate(
        flops=2 * R * F * n_pad,
        transcendentals=0,
        bytes_accessed=(R * F * 4            # roi_feats (f32)
                        + F * n_pad * 2      # fused weights (bf16)
                        + n_pad * 4          # fused bias (f32)
                        + R * n_pad * out_bytes),
    )

    fused = pl.pallas_call(
        _box_predictor_kernel,
        out_shape=jax.ShapeDtypeStruct((R, n_pad), out_dtype),
        grid_spec=pl.GridSpec(
            grid=grid,
            in_specs=[
                pl.BlockSpec((tile_r, F), lambda i: (i, 0)),   # roi-feature tile
                pl.BlockSpec((F, n_pad), lambda i: (0, 0)),    # fused weights
                pl.BlockSpec((1, n_pad), lambda i: (0, 0)),    # fused bias
            ],
            out_specs=pl.BlockSpec((tile_r, n_pad), lambda i: (i, 0)),
        ),
        compiler_params=pltpu.CompilerParams(
            dimension_semantics=("parallel",)),
        cost_estimate=cost,
    )(roi_feats, w_fused, b_fused)

    # Both slices start at lane-aligned (multiple-of-128) column offsets.
    scores = fused[:, :C]
    deltas = fused[:, c_pad:c_pad + C4]
    return scores, deltas


if __name__ == "__main__":
    # Small deterministic shapes consistent with the box head; R is chosen
    # NOT to be a multiple of the tile to exercise the ragged-last-block path
    # (real Faster R-CNN proposal counts are ~1000 and variable).
    num_rois = 300       # R  (tile_r=256 -> grid of 2, last block ragged)
    in_features = 256    # F  (torchvision's real value is 1024)
    num_classes = 8      # C  (including background)

    key = jax.random.PRNGKey(0)
    k1, k2, k3, k4, k5 = jax.random.split(key, 5)

    roi_feats = jax.random.normal(k1, (num_rois, in_features), jnp.float32)
    # Parameters stored pre-transposed as [F, out] (== PyTorch Linear W.T).
    w_cls = 0.02 * jax.random.normal(k2, (in_features, num_classes), jnp.float32)
    b_cls = 0.01 * jax.random.normal(k3, (1, num_classes), jnp.float32)
    w_bbox = 0.02 * jax.random.normal(k4, (in_features, num_classes * 4), jnp.float32)
    b_bbox = 0.01 * jax.random.normal(k5, (1, num_classes * 4), jnp.float32)

    # One-time parameter fusion (init-time, hoisted out of the forward path).
    fused_params = fuse_box_predictor_params(w_cls, b_cls, w_bbox, b_bbox)
    fused_params = jax.block_until_ready(fused_params)

    scores, deltas = fast_rcnn_predictor(roi_feats, fused_params)
    jax.block_until_ready((scores, deltas))

    # Pure-JAX reference (same math as nn.Linear, f32).
    scores_ref = roi_feats @ w_cls + b_cls
    deltas_ref = roi_feats @ w_bbox + b_bbox
    assert scores.shape == (num_rois, num_classes)
    assert deltas.shape == (num_rois, num_classes * 4)
    # bf16 weights/activations with f32 accumulation -> relaxed tolerance.
    assert jnp.allclose(scores, scores_ref, atol=3e-2, rtol=3e-2)
    assert jnp.allclose(deltas, deltas_ref, atol=3e-2, rtol=3e-2)

    print("KERNEL_OK")
</pallas_src>

<mosaic_0001>
module attributes {stable_mosaic.version = 11 : i64} {
  func.func @_box_predictor_kernel(%arg0: i32, %arg1: memref<256x256xf32, #tpu.memory_space<vmem>>, %arg2: memref<256x256xbf16, #tpu.memory_space<vmem>>, %arg3: memref<1x256xf32, #tpu.memory_space<vmem>>, %arg4: memref<256x256xf32, #tpu.memory_space<vmem>>) attributes {dimension_semantics = [#tpu.dimension_semantics<parallel>], iteration_bounds = array<i64: 2>, scalar_prefetch = 0 : i64, scratch_operands = 0 : i64, tpu.core_type = #tpu.core_type<tc>, window_params = [{transform_indices = @transform_0, window_bounds = array<i64: 256, 256>}, {pipeline_mode = #tpu.pipeline_mode<synchronous>, transform_indices = @transform_1, window_bounds = array<i64: 256, 256>}, {pipeline_mode = #tpu.pipeline_mode<synchronous>, transform_indices = @transform_2, window_bounds = array<i64: 1, 256>}, {transform_indices = @transform_3, window_bounds = array<i64: 256, 256>}]} {
    %c0 = arith.constant 0 : index
    %c0_0 = arith.constant 0 : index
    %0 = vector.load %arg1[%c0, %c0_0] : memref<256x256xf32, #tpu.memory_space<vmem>>, vector<256x256xf32>
    %1 = arith.truncf %0 : vector<256x256xf32> to vector<256x256xbf16>
    %c0_1 = arith.constant 0 : index
    %c0_2 = arith.constant 0 : index
    %2 = vector.load %arg2[%c0_1, %c0_2] : memref<256x256xbf16, #tpu.memory_space<vmem>>, vector<256x256xbf16>
    %cst = arith.constant dense<0.000000e+00> : vector<256x256xf32>
    %3 = tpu.matmul %1, %2, %cst {dimension_numbers = #tpu.dot_dimension_numbers<[1], [0], [0], [1], [0, 0, 1, 1], [], []>} : vector<256x256xbf16>, vector<256x256xbf16>, vector<256x256xf32> -> vector<256x256xf32>
    %c0_3 = arith.constant 0 : index
    %c0_4 = arith.constant 0 : index
    %4 = vector.load %arg3[%c0_3, %c0_4] : memref<1x256xf32, #tpu.memory_space<vmem>>, vector<1x256xf32>
    %5 = vector.broadcast %4 : vector<1x256xf32> to vector<256x256xf32>
    %6 = arith.addf %3, %5 : vector<256x256xf32>
    %c0_5 = arith.constant 0 : index
    %c0_6 = arith.constant 0 : index
    %7 = vector.load %arg4[%c0_5, %c0_6] : memref<256x256xf32, #tpu.memory_space<vmem>>, vector<256x256xf32>
    tpu.vector_store %arg4[%c0_5, %c0_6], %6 {strides = array<i32>} : memref<256x256xf32, #tpu.memory_space<vmem>>, vector<256x256xf32>,
    return
  }
  func.func @transform_0(%arg0: i32) -> (i32, i32) {
    %c0_i32 = arith.constant 0 : i32
    %c0_i32_0 = arith.constant 0 : i32
    return %arg0, %c0_i32 : i32, i32
  }
  func.func @transform_1(%arg0: i32) -> (i32, i32) {
    %c0_i32 = arith.constant 0 : i32
    %c0_i32_0 = arith.constant 0 : i32
    %c0_i32_1 = arith.constant 0 : i32
    return %c0_i32, %c0_i32_0 : i32, i32
  }
  func.func @transform_2(%arg0: i32) -> (i32, i32) {
    %c0_i32 = arith.constant 0 : i32
    %c0_i32_0 = arith.constant 0 : i32
    %c0_i32_1 = arith.constant 0 : i32
    return %c0_i32, %c0_i32_0 : i32, i32
  }
  func.func @transform_3(%arg0: i32) -> (i32, i32) {
    %c0_i32 = arith.constant 0 : i32
    %c0_i32_0 = arith.constant 0 : i32
    return %arg0, %c0_i32 : i32, i32
  }
}

</mosaic_0001>

<llo_original>
// kernel: tpu_custom_call.1
$region0: #{tpu_custom_call.1}
  #allocation0 [shape = 'u32[]', space=smem, size = 0x4, offset = 0x4, fixed_abs, tag = 'smem constant byte address 0x4 - core index']
  #allocation1 [shape = 'u32[72,128]{1,0:T(1,128)}', space=vmem, size = 0x9000, scoped, tag = 'internal scratch']
  %s0 = inlined_call_operand.hbm [shape: f32[300,256], index: 0, kind: input, shape index: {}]
  %s1 = inlined_call_operand.hbm [shape: bf16[256,256], index: 1, kind: input, shape index: {}]
  %s2 = inlined_call_operand.hbm [shape: f32[1,256], index: 2, kind: input, shape index: {}]
  %s3 = inlined_call_operand.hbm [shape: f32[300,256], index: 3, kind: output, shape index: {}]
  %s4 = sld [smem:[#allocation0]]
  $region57: #{tpu_custom_call.1} parent=0
    _
  %s6 = ssub.s32 1, %s4
  %s7 = scalar_select 0, %s6, %s4
  $region1: #{tpu_custom_call.1} parent=0
    #allocation2 [shape = 'u8[524288]{0}', space=vmem, size = 0x80000, scoped, tag = 'input window, operand 0']
    #allocation3 [shape = 's32[2]{0}', space=sflag, size = 0x8, scoped, tag = 'scoped memory for tpu_custom_call.1']
    #allocation4 [shape = 's32[2]{0}', space=sflag, size = 0x8, scoped, tag = 'scoped memory for tpu_custom_call.1']
    #allocation5 [shape = 'u8[131072]{0}', space=vmem, size = 0x20000, scoped, tag = 'input window, operand 1, single buffered']
    #allocation6 [shape = 's32[1]{0}', space=sflag, size = 0x4, scoped, tag = 'scoped memory for tpu_custom_call.1']
    #allocation7 [shape = 'u8[1024]{0}', space=vmem, size = 0x400, scoped, tag = 'input window, operand 2, single buffered']
    #allocation8 [shape = 'u8[524288]{0}', space=vmem, size = 0x80000, scoped, tag = 'output window, operand 0']
    %8 = vsyncpa [#allocation3], 0
    %s9 = scalar_lea.sflag [#allocation3], 1
    %10 = vsyncpa %s9, 0
    %11 = vsyncpa [#allocation6], 0
    %12 = vsyncpa [#allocation4], 0
    %s13 = scalar_lea.sflag [#allocation4], 1
    %14 = vsyncpa %s13, 0
    loop: start=0, step=1, limit=4
    $region2: #{tpu_custom_call.1} parent=1 // loop_pre_header
      _
    $region3: #{tpu_custom_call.1} parent=1 // loop_header
      %s16 = sphi 0, %s20
      %p17 = scmp.ge.s32.totalorder %s16, 4
      %s26 = sphi 0, %s28
      %s29 = sphi 0, %s26
      %s30 = sphi 0, %s29
      %s46 = sphi 0, %s30
      %s50 = sphi 0, %s50
      %s52 = sphi 0, %s50
      %s53 = sphi 0, %s52
      %s67 = sphi 0, %s53
      %s71 = sphi 0, %s71
      %s73 = sphi 0, %s71
      %s74 = sphi 0, %s73
      %s88 = sphi 0, %s74
      %s94 = sphi 0, %s96
      %s97 = sphi 0, %s94
      %s98 = sphi 0, %s97
      %s114 = sphi 0, %s98
    $region4: #{tpu_custom_call.1} parent=1 // loop_header_branch
      %19 = sbr.rel (%p17) target = $region8
    $region5: #{tpu_custom_call.1} parent=1 // loop_body
      %s21 = ssub.s32 %s16, 1
      %s22 = ssub.s32 %s16, 2
      %s23 = sadd.s32 %s16, 1
      %s24 = ssub.s32 %s16, %s23
      %p25 = scmp.eq.s32.totalorder %s24, 0
      %s27 = sadd.s32 %s26, 1
      %s28 = scalar_select %p25, %s26, %s27
      %p31 = pneg %p25
      %p32 = scmp.eq.s32.totalorder %s16, 1
      %p33 = por %p31, %p32
      %p34 = scmp.ne.s32.totalorder %s26, %s29
      %p35 = scmp.eq.s32.totalorder %s16, 0
      %p36 = por %p34, %p35
      %p37 = scmp.ne.s32.totalorder %s26, %s29
      %p38 = scmp.eq.s32.totalorder %s21, 1
      %p39 = por %p37, %p38
      %p40 = scmp.ne.s32.totalorder %s29, %s30
      %p41 = scmp.eq.s32.totalorder %s21, 0
      %p42 = por %p40, %p41
      %p43 = scmp.ne.s32.totalorder %s29, %s30
      %p44 = scmp.eq.s32.totalorder %s22, 1
      %p45 = por %p43, %p44
      %p47 = scmp.ne.s32.totalorder %s30, %s46
      %p48 = scmp.eq.s32.totalorder %s22, 0
      %p49 = por %p47, %p48
      %s51 = sadd.s32 %s50, 1
      %p54 = scmp.eq.s32.totalorder %s16, 1
      %p55 = scmp.ne.s32.totalorder %s50, %s52
      %p56 = scmp.eq.s32.totalorder %s16, 0
      %p57 = por %p55, %p56
      %p58 = scmp.ne.s32.totalorder %s50, %s52
      %p59 = scmp.eq.s32.totalorder %s21, 1
      %p60 = por %p58, %p59
      %p61 = scmp.ne.s32.totalorder %s52, %s53
      %p62 = scmp.eq.s32.totalorder %s21, 0
      %p63 = por %p61, %p62
      %p64 = scmp.ne.s32.totalorder %s52, %s53
      %p65 = scmp.eq.s32.totalorder %s22, 1
      %p66 = por %p64, %p65
      %p68 = scmp.ne.s32.totalorder %s53, %s67
      %p69 = scmp.eq.s32.totalorder %s22, 0
      %p70 = por %p68, %p69
      %s72 = sadd.s32 %s71, 1
      %p75 = scmp.eq.s32.totalorder %s16, 1
      %p76 = scmp.ne.s32.totalorder %s71, %s73
      %p77 = scmp.eq.s32.totalorder %s16, 0
      %p78 = por %p76, %p77
      %p79 = scmp.ne.s32.totalorder %s71, %s73
      %p80 = scmp.eq.s32.totalorder %s21, 1
      %p81 = por %p79, %p80
      %p82 = scmp.ne.s32.totalorder %s73, %s74
      %p83 = scmp.eq.s32.totalorder %s21, 0
      %p84 = por %p82, %p83
      %p85 = scmp.ne.s32.totalorder %s73, %s74
      %p86 = scmp.eq.s32.totalorder %s22, 1
      %p87 = por %p85, %p86
      %p89 = scmp.ne.s32.totalorder %s74, %s88
      %p90 = scmp.eq.s32.totalorder %s22, 0
      %p91 = por %p89, %p90
      %s92 = ssub.s32 %s16, %s23
      %p93 = scmp.eq.s32.totalorder %s92, 0
      %s95 = sadd.s32 %s94, 1
      %s96 = scalar_select %p93, %s94, %s95
      %p99 = pneg %p93
      %p100 = scmp.eq.s32.totalorder %s16, 1
      %p101 = por %p99, %p100
      %p102 = scmp.ne.s32.totalorder %s94, %s97
      %p103 = scmp.eq.s32.totalorder %s16, 0
      %p104 = por %p102, %p103
      %p105 = scmp.ne.s32.totalorder %s94, %s97
      %p106 = scmp.eq.s32.totalorder %s21, 1
      %p107 = por %p105, %p106
      %p108 = scmp.ne.s32.totalorder %s97, %s98
      %p109 = scmp.eq.s32.totalorder %s21, 0
      %p110 = por %p108, %p109
      %p111 = scmp.ne.s32.totalorder %s97, %s98
      %p112 = scmp.eq.s32.totalorder %s22, 1
      %p113 = por %p111, %p112
      %p115 = scmp.ne.s32.totalorder %s98, %s114
      %p116 = scmp.eq.s32.totalorder %s22, 0
      %p117 = por %p115, %p116
      %p118 = scmp.le.s32.totalorder 1, %s16
      %p119 = scmp.lt.s32.totalorder %s16, 3
      %p120 = pnand %p118, %p119
      %p121 = pneg %p120
      // Predicated region
      $region9: #{tpu_custom_call.1} parent=5 // pred_check
        _
      $region10: #{tpu_custom_call.1} parent=5 // pred_check_branch
        %123 = sbr.rel (%p120) target = $region12
      $region11: #{tpu_custom_call.1} parent=5 // pred_region
        %s124 = ssub.s32 %s16, 1
        // Predicated region
        $region13: #{tpu_custom_call.1} parent=11 // pred_check
          %p125 = pneg %p63
        $region14: #{tpu_custom_call.1} parent=11 // pred_check_branch
          %127 = sbr.rel (%p125) target = $region16
        $region15: #{tpu_custom_call.1} parent=11 // pred_region
          %129 = vsyncadd [#allocation6], 0
          %s130 = sshll.u32 %s1, 4
          %s131 = int_to_ptr.hbm [resolvable:$true] %s130
          %s132 = sshll.u32 [#allocation5], 4
          %s133 = int_to_ptr.vmem [resolvable:$true] %s132
          %138 = dma.hbm_to_vmem [thread:$0]  %s131, 4096, %s133, [#allocation6], 128, 128, 8
        $region16: #{tpu_custom_call.1} parent=11 // pred_fallthru
          _
        // Predicated region
        $region17: #{tpu_custom_call.1} parent=11 // pred_check
          %p139 = pneg %p84
        $region18: #{tpu_custom_call.1} parent=11 // pred_check_branch
          %141 = sbr.rel (%p139) target = $region20
        $region19: #{tpu_custom_call.1} parent=11 // pred_region
          %143 = vsyncadd [#allocation6], 0
          %s145 = sshll.u32 %s2, 4
          %s146 = int_to_ptr.hbm [resolvable:$true] %s145
          %s147 = sshll.u32 [#allocation7], 4
          %s148 = int_to_ptr.vmem [resolvable:$true] %s147
          %150 = dma.hbm_to_vmem [thread:$0]  %s146, 32, %s148, [#allocation6]
        $region20: #{tpu_custom_call.1} parent=11 // pred_fallthru
          _
      $region12: #{tpu_custom_call.1} parent=5 // pred_fallthru
        _
      %p151 = scmp.lt.s32.totalorder %s16, 2
      // Predicated region
      $region21: #{tpu_custom_call.1} parent=5 // pred_check
        %p152 = pneg %p151
      $region22: #{tpu_custom_call.1} parent=5 // pred_check_branch
        %154 = sbr.rel (%p152) target = $region24
      $region23: #{tpu_custom_call.1} parent=5 // pred_region
        // Predicated region
        $region25: #{tpu_custom_call.1} parent=23 // pred_check
          %p155 = pneg %p36
        $region26: #{tpu_custom_call.1} parent=23 // pred_check_branch
          %157 = sbr.rel (%p155) target = $region28
        $region27: #{tpu_custom_call.1} parent=23 // pred_region
          %s158 = sand.u32 %s26, 1
          %s159 = scalar_lea.sflag [#allocation3], %s158
          %s160 = sand.u32 %s26, 1
          %s161 = smul.addr %s160, 512
          %s162 = scalar_lea.vmem [#allocation2], %s161
          %s163 = smul.u32 32, %s16
          %s164 = ssub.s32 38, %s163
          %p165 = scmp.lt.s32.totalorder %s164, 32
          %s166 = scalar_select %p165, %s164, 32
          %s167 = smul.u32 8, %s166
          %s168 = smul.u32 %s167, 2
          %s169 = ssub.s32 512, %s168
          %s170 = sshll.u32 %s169, 4
          %171 = vsyncadd %s159, %s170
          %p172 = scmp.ne.s32.totalorder 0, %s168
          %s173 = smul.addr %s163, 2
          %s174 = smul.addr %s173, 8
          %s175 = scalar_lea.hbm %s0, %s174
          %s176 = smul.u32 16, %s166
          %s177 = sshll.u32 %s175, 4
          %s178 = int_to_ptr.hbm [resolvable:$true] %s177
          %s179 = sshll.u32 %s162, 4
          %s180 = int_to_ptr.vmem [resolvable:$true] %s179
          %s181 = sshll.u32 %s176, 4
          %185 = dma.hbm_to_vmem [thread:$0]  (%p172), %s178, %s181, %s180, %s159, 256, 256, 16
        $region28: #{tpu_custom_call.1} parent=23 // pred_fallthru
          _
      $region24: #{tpu_custom_call.1} parent=5 // pred_fallthru
        _
      %p186 = scmp.le.s32.totalorder 1, %s16
      %p187 = scmp.lt.s32.totalorder %s16, 3
      %p188 = pnand %p186, %p187
      %p189 = pneg %p188
      // Predicated region
      $region29: #{tpu_custom_call.1} parent=5 // pred_check
        _
      $region30: #{tpu_custom_call.1} parent=5 // pred_check_branch
        %191 = sbr.rel (%p188) target = $region32
      $region31: #{tpu_custom_call.1} parent=5 // pred_region
        %s192 = ssub.s32 %s16, 1
        %s193 = sand.u32 %s29, 1
        %s194 = scalar_lea.sflag [#allocation3], %s193
        %s195 = sand.u32 %s29, 1
        %s196 = smul.addr %s195, 512
        %s197 = scalar_lea.vmem [#allocation2], %s196
        // Predicated region
        $region33: #{tpu_custom_call.1} parent=31 // pred_check
          %p198 = pneg %p42
        $region34: #{tpu_custom_call.1} parent=31 // pred_check_branch
          %200 = sbr.rel (%p198) target = $region36
        $region35: #{tpu_custom_call.1} parent=31 // pred_region
          %202 = dma.done %s194, 8192
        $region36: #{tpu_custom_call.1} parent=31 // pred_fallthru
          _
        // Predicated region
        $region37: #{tpu_custom_call.1} parent=31 // pred_check
          %p203 = pneg %p63
        $region38: #{tpu_custom_call.1} parent=31 // pred_check_branch
          %205 = sbr.rel (%p203) target = $region40
        $region39: #{tpu_custom_call.1} parent=31 // pred_region
          %207 = dma.done [#allocation6], 4096
        $region40: #{tpu_custom_call.1} parent=31 // pred_fallthru
          _
        // Predicated region
        $region41: #{tpu_custom_call.1} parent=31 // pred_check
          %p208 = pneg %p84
        $region42: #{tpu_custom_call.1} parent=31 // pred_check_branch
          %210 = sbr.rel (%p208) target = $region44
        $region43: #{tpu_custom_call.1} parent=31 // pred_region
          %212 = dma.done [#allocation6], 32
        $region44: #{tpu_custom_call.1} parent=31 // pred_fallthru
          _
        %s213 = sand.u32 %s29, 1
        %s214 = scalar_lea.sflag [#allocation3], %s213
        %s215 = sand.u32 %s29, 1
        %s216 = smul.addr %s215, 512
        %s217 = scalar_lea.vmem [#allocation2], %s216
        %p218 = pneg %p42
        %p219 = pneg %p39
        %p220 = pneg %p63
        %p221 = pneg %p60
        %p222 = pneg %p84
        %p223 = pneg %p81
        %p224 = pneg %p110
        %p225 = pneg %p107
        %s226 = sand.u32 %s97, 1
        %s227 = scalar_lea.sflag [#allocation4], %s226
        %s228 = sand.u32 %s97, 1
        %s229 = smul.addr %s228, 512
        %s230 = scalar_lea.vmem [#allocation8], %s229
        %s231 = smul.u32 32, %s21
        %s232 = ssub.s32 38, %s231
        %p233 = scmp.lt.s32.totalorder %s232, 32
        %s234 = scalar_select %p233, %s232, 32
        %s235 = smul.u32 8, %s234
        %s236 = smul.u32 %s235, 2
        %s237 = smul.u32 32, %s21
        %s238 = ssub.s32 38, %s237
        %p239 = scmp.lt.s32.totalorder %s238, 32
        %s240 = scalar_select %p239, %s238, 32
        %s241 = smul.u32 8, %s240
        %s242 = smul.u32 %s241, 2
        %v243 = vld [vmem:[%s197] sm:$0xff]
        %v244 = vld [vmem:[%s197 + $0x8] sm:$0xff]
        %v245 = vld [vmem:[%s197 + $0x10] sm:$0xff]
        %v246 = vld [vmem:[%s197 + $0x18] sm:$0xff]
        %v247 = vld [vmem:[%s197 + $0x20] sm:$0xff]
        %v248 = vld [vmem:[%s197 + $0x28] sm:$0xff]
        %v249 = vld [vmem:[%s197 + $0x30] sm:$0xff]
        %v250 = vld [vmem:[%s197 + $0x38] sm:$0xff]
        %v251 = vld [vmem:[%s197 + $0x40] sm:$0xff]
        %v252 = vld [vmem:[%s197 + $0x48] sm:$0xff]
        %v253 = vld [vmem:[%s197 + $0x50] sm:$0xff]
        %v254 = vld [vmem:[%s197 + $0x58] sm:$0xff]
        %v255 = vld [vmem:[%s197 + $0x60] sm:$0xff]
        %v256 = vld [vmem:[%s197 + $0x68] sm:$0xff]
        %v257 = vld [vmem:[%s197 + $0x70] sm:$0xff]
        %v258 = vld [vmem:[%s197 + $0x78] sm:$0xff]
        %v259 = vld [vmem:[%s197 + $0x80] sm:$0xff]
        %v260 = vld [vmem:[%s197 + $0x88] sm:$0xff]
        %v261 = vld [vmem:[%s197 + $0x90] sm:$0xff]
        %v262 = vld [vmem:[%s197 + $0x98] sm:$0xff]
        %v263 = vld [vmem:[%s197 + $0xa0] sm:$0xff]
        %v264 = vld [vmem:[%s197 + $0xa8] sm:$0xff]
        %v265 = vld [vmem:[%s197 + $0xb0] sm:$0xff]
        %v266 = vld [vmem:[%s197 + $0xb8] sm:$0xff]
        %v267 = vld [vmem:[%s197 + $0xc0] sm:$0xff]
        %v268 = vld [vmem:[%s197 + $0xc8] sm:$0xff]
        %v269 = vld [vmem:[%s197 + $0xd0] sm:$0xff]
        %v270 = vld [vmem:[%s197 + $0xd8] sm:$0xff]
        %v271 = vld [vmem:[%s197 + $0xe0] sm:$0xff]
        %v272 = vld [vmem:[%s197 + $0xe8] sm:$0xff]
        %v273 = vld [vmem:[%s197 + $0xf0] sm:$0xff]
        %v274 = vld [vmem:[%s197 + $0xf8] sm:$0xff]
        %v275 = vld [vmem:[%s197 + $0x100] sm:$0xff]
        %v276 = vld [vmem:[%s197 + $0x108] sm:$0xff]
        %v277 = vld [vmem:[%s197 + $0x110] sm:$0xff]
        %v278 = vld [vmem:[%s197 + $0x118] sm:$0xff]
        %v279 = vld [vmem:[%s197 + $0x120] sm:$0xff]
        %v280 = vld [vmem:[%s197 + $0x128] sm:$0xff]
        %v281 = vld [vmem:[%s197 + $0x130] sm:$0xff]
        %v282 = vld [vmem:[%s197 + $0x138] sm:$0xff]
        %v283 = vld [vmem:[%s197 + $0x140] sm:$0xff]
        %v284 = vld [vmem:[%s197 + $0x148] sm:$0xff]
        %v285 = vld [vmem:[%s197 + $0x150] sm:$0xff]
        %v286 = vld [vmem:[%s197 + $0x158] sm:$0xff]
        %v287 = vld [vmem:[%s197 + $0x160] sm:$0xff]
        %v288 = vld [vmem:[%s197 + $0x168] sm:$0xff]
        %v289 = vld [vmem:[%s197 + $0x170] sm:$0xff]
        %v290 = vld [vmem:[%s197 + $0x178] sm:$0xff]
        %v291 = vld [vmem:[%s197 + $0x180] sm:$0xff]
        %v292 = vld [vmem:[%s197 + $0x188] sm:$0xff]
        %v293 = vld [vmem:[%s197 + $0x190] sm:$0xff]
        %v294 = vld [vmem:[%s197 + $0x198] sm:$0xff]
        %v295 = vld [vmem:[%s197 + $0x1a0] sm:$0xff]
        %v296 = vld [vmem:[%s197 + $0x1a8] sm:$0xff]
        %v297 = vld [vmem:[%s197 + $0x1b0] sm:$0xff]
        %v298 = vld [vmem:[%s197 + $0x1b8] sm:$0xff]
        %v299 = vld [vmem:[%s197 + $0x1c0] sm:$0xff]
        %v300 = vld [vmem:[%s197 + $0x1c8] sm:$0xff]
        %v301 = vld [vmem:[%s197 + $0x1d0] sm:$0xff]
        %v302 = vld [vmem:[%s197 + $0x1d8] sm:$0xff]
        %v303 = vld [vmem:[%s197 + $0x1e0] sm:$0xff]
        %v304 = vld [vmem:[%s197 + $0x1e8] sm:$0xff]
        %v305 = vld [vmem:[%s197 + $0x1f0] sm:$0xff]
        %v306 = vld [vmem:[%s197 + $0x1f8] sm:$0xff]
        %v307 = vpack.c.bf16 %v245, %v243
        %v308 = vpack.c.bf16 %v246, %v244
        %v309 = vpack.c.bf16 %v249, %v247
        %v310 = vpack.c.bf16 %v250, %v248
        %v311 = vpack.c.bf16 %v253, %v251
        %v312 = vpack.c.bf16 %v254, %v252
        %v313 = vpack.c.bf16 %v257, %v255
        %v314 = vpack.c.bf16 %v258, %v256
        %v315 = vpack.c.bf16 %v261, %v259
        %v316 = vpack.c.bf16 %v262, %v260
        %v317 = vpack.c.bf16 %v265, %v263
        %v318 = vpack.c.bf16 %v266, %v264
        %v319 = vpack.c.bf16 %v269, %v267
        %v320 = vpack.c.bf16 %v270, %v268
        %v321 = vpack.c.bf16 %v273, %v271
        %v322 = vpack.c.bf16 %v274, %v272
        %v323 = vpack.c.bf16 %v277, %v275
        %v324 = vpack.c.bf16 %v278, %v276
        %v325 = vpack.c.bf16 %v281, %v279
        %v326 = vpack.c.bf16 %v282, %v280
        %v327 = vpack.c.bf16 %v285, %v283
        %v328 = vpack.c.bf16 %v286, %v284
        %v329 = vpack.c.bf16 %v289, %v287
        %v330 = vpack.c.bf16 %v290, %v288
        %v331 = vpack.c.bf16 %v293, %v291
        %v332 = vpack.c.bf16 %v294, %v292
        %v333 = vpack.c.bf16 %v297, %v295
        %v334 = vpack.c.bf16 %v298, %v296
        %v335 = vpack.c.bf16 %v301, %v299
        %v336 = vpack.c.bf16 %v302, %v300
        %v337 = vpack.c.bf16 %v305, %v303
        %v338 = vpack.c.bf16 %v306, %v304
        %v339 = vld [vmem:[#allocation5] sm:$0xff]
        %v340 = vld [vmem:[#allocation5 + $0x8] sm:$0xff]
        %v341 = vld [vmem:[#allocation5 + $0x10] sm:$0xff]
        %v342 = vld [vmem:[#allocation5 + $0x18] sm:$0xff]
        %v343 = vld [vmem:[#allocation5 + $0x20] sm:$0xff]
        %v344 = vld [vmem:[#allocation5 + $0x28] sm:$0xff]
        %v345 = vld [vmem:[#allocation5 + $0x30] sm:$0xff]
        %v346 = vld [vmem:[#allocation5 + $0x38] sm:$0xff]
        %v347 = vld [vmem:[#allocation5 + $0x40] sm:$0xff]
        %v348 = vld [vmem:[#allocation5 + $0x48] sm:$0xff]
        %v349 = vld [vmem:[#allocation5 + $0x50] sm:$0xff]
        %v350 = vld [vmem:[#allocation5 + $0x58] sm:$0xff]
        %v351 = vld [vmem:[#allocation5 + $0x60] sm:$0xff]
        %v352 = vld [vmem:[#allocation5 + $0x68] sm:$0xff]
        %v353 = vld [vmem:[#allocation5 + $0x70] sm:$0xff]
        %v354 = vld [vmem:[#allocation5 + $0x78] sm:$0xff]
        %v355 = vld [vmem:[#allocation5 + $0x80] sm:$0xff]
        %v356 = vld [vmem:[#allocation5 + $0x88] sm:$0xff]
        %v357 = vld [vmem:[#allocation5 + $0x90] sm:$0xff]
        %v358 = vld [vmem:[#allocation5 + $0x98] sm:$0xff]
        %v359 = vld [vmem:[#allocation5 + $0xa0] sm:$0xff]
        %v360 = vld [vmem:[#allocation5 + $0xa8] sm:$0xff]
        %v361 = vld [vmem:[#allocation5 + $0xb0] sm:$0xff]
        %v362 = vld [vmem:[#allocation5 + $0xb8] sm:$0xff]
        %v363 = vld [vmem:[#allocation5 + $0xc0] sm:$0xff]
        %v364 = vld [vmem:[#allocation5 + $0xc8] sm:$0xff]
        %v365 = vld [vmem:[#allocation5 + $0xd0] sm:$0xff]
        %v366 = vld [vmem:[#allocation5 + $0xd8] sm:$0xff]
        %v367 = vld [vmem:[#allocation5 + $0xe0] sm:$0xff]
        %v368 = vld [vmem:[#allocation5 + $0xe8] sm:$0xff]
        %v369 = vld [vmem:[#allocation5 + $0xf0] sm:$0xff]
        %v370 = vld [vmem:[#allocation5 + $0xf8] sm:$0xff]
        %v371 = vld [vmem:[#allocation7] sm:$0x3]
        %v373 = vperm.slane %v371, 0
        %v374 = vperm.slane %v371, 1
        %v409 = vunpack.c.l.b16 %v339
        %v410 = vunpack.c.h.b16 %v339
        %v411 = vunpack.c.l.b16 %v340
        %v412 = vunpack.c.h.b16 %v340
        %v413 = vunpack.c.l.b16 %v341
        %v414 = vunpack.c.h.b16 %v341
        %v415 = vunpack.c.l.b16 %v342
        %v416 = vunpack.c.h.b16 %v342
        %v417 = vunpack.c.l.b16 %v343
        %v418 = vunpack.c.h.b16 %v343
        %v419 = vunpack.c.l.b16 %v344
        %v420 = vunpack.c.h.b16 %v344
        %v421 = vunpack.c.l.b16 %v345
        %v422 = vunpack.c.h.b16 %v345
        %v423 = vunpack.c.l.b16 %v346
        %v424 = vunpack.c.h.b16 %v346
        %v425 = vunpack.c.l.b16 %v347
        %v426 = vunpack.c.h.b16 %v347
        %v427 = vunpack.c.l.b16 %v348
        %v428 = vunpack.c.h.b16 %v348
        %v429 = vunpack.c.l.b16 %v349
        %v430 = vunpack.c.h.b16 %v349
        %v431 = vunpack.c.l.b16 %v350
        %v432 = vunpack.c.h.b16 %v350
        %v433 = vunpack.c.l.b16 %v351
        %v434 = vunpack.c.h.b16 %v351
        %v435 = vunpack.c.l.b16 %v352
        %v436 = vunpack.c.h.b16 %v352
        %v437 = vunpack.c.l.b16 %v353
        %v438 = vunpack.c.h.b16 %v353
        %v439 = vunpack.c.l.b16 %v354
        %v440 = vunpack.c.h.b16 %v354
        %v441 = vunpack.c.l.b16 %v355
        %v442 = vunpack.c.h.b16 %v355
        %v443 = vunpack.c.l.b16 %v356
        %v444 = vunpack.c.h.b16 %v356
        %v445 = vunpack.c.l.b16 %v357
        %v446 = vunpack.c.h.b16 %v357
        %v447 = vunpack.c.l.b16 %v358
        %v448 = vunpack.c.h.b16 %v358
        %v449 = vunpack.c.l.b16 %v359
        %v450 = vunpack.c.h.b16 %v359
        %v451 = vunpack.c.l.b16 %v360
        %v452 = vunpack.c.h.b16 %v360
        %v453 = vunpack.c.l.b16 %v361
        %v454 = vunpack.c.h.b16 %v361
        %v455 = vunpack.c.l.b16 %v362
        %v456 = vunpack.c.h.b16 %v362
        %v457 = vunpack.c.l.b16 %v363
        %v458 = vunpack.c.h.b16 %v363
        %v459 = vunpack.c.l.b16 %v364
        %v460 = vunpack.c.h.b16 %v364
        %v461 = vunpack.c.l.b16 %v365
        %v462 = vunpack.c.h.b16 %v365
        %v463 = vunpack.c.l.b16 %v366
        %v464 = vunpack.c.h.b16 %v366
        %v465 = vunpack.c.l.b16 %v367
        %v466 = vunpack.c.h.b16 %v367
        %v467 = vunpack.c.l.b16 %v368
        %v468 = vunpack.c.h.b16 %v368
        %v469 = vunpack.c.l.b16 %v369
        %v470 = vunpack.c.h.b16 %v369
        %v471 = vunpack.c.l.b16 %v370
        %v472 = vunpack.c.h.b16 %v370
        %v473 = vpack.c.b16 %v411, %v409
        %v474 = vpack.c.b16 %v412, %v410
        %v475 = vpack.c.b16 %v415, %v413
        %v476 = vpack.c.b16 %v416, %v414
        %v477 = vpack.c.b16 %v419, %v417
        %v478 = vpack.c.b16 %v420, %v418
        %v479 = vpack.c.b16 %v423, %v421
        %v480 = vpack.c.b16 %v424, %v422
        %v481 = vpack.c.b16 %v427, %v425
        %v482 = vpack.c.b16 %v428, %v426
        %v483 = vpack.c.b16 %v431, %v429
        %v484 = vpack.c.b16 %v432, %v430
        %v485 = vpack.c.b16 %v435, %v433
        %v486 = vpack.c.b16 %v436, %v434
        %v487 = vpack.c.b16 %v439, %v437
        %v488 = vpack.c.b16 %v440, %v438
        %v489 = vpack.c.b16 %v443, %v441
        %v490 = vpack.c.b16 %v444, %v442
        %v491 = vpack.c.b16 %v447, %v445
        %v492 = vpack.c.b16 %v448, %v446
        %v493 = vpack.c.b16 %v451, %v449
        %v494 = vpack.c.b16 %v452, %v450
        %v495 = vpack.c.b16 %v455, %v453
        %v496 = vpack.c.b16 %v456, %v454
        %v497 = vpack.c.b16 %v459, %v457
        %v498 = vpack.c.b16 %v460, %v458
        %v499 = vpack.c.b16 %v463, %v461
        %v500 = vpack.c.b16 %v464, %v462
        %v501 = vpack.c.b16 %v467, %v465
        %v502 = vpack.c.b16 %v468, %v466
        %v503 = vpack.c.b16 %v471, %v469
        %v504 = vpack.c.b16 %v472, %v470
        %537 = vmatpush.bf16.msra.mxu0 %v487
        %538 = vmatpush.bf16.msra.mxu0 %v485
        %539 = vmatpush.bf16.msra.mxu0 %v483
        %540 = vmatpush.bf16.msra.mxu0 %v481
        %541 = vmatpush.bf16.msra.mxu0 %v479
        %542 = vmatpush.bf16.msra.mxu0 %v477
        %543 = vmatpush.bf16.msra.mxu0 %v475
        %544 = vmatpush.bf16.msra.mxu0 %v473
        %545 = vmatmul.bf16.gmra.mxu0 %v307
        %v546 = vpop.f32.mrf.mxu0
        %v547 = vadd.f32 %v373, %v546
        %v548 = vpop.f32.mrf.mxu0
        %v549 = vadd.f32 %v373, %v548
        %550 = vmatmul.bf16.gmra.mxu0 %v309
        %v551 = vpop.f32.mrf.mxu0
        %v552 = vadd.f32 %v373, %v551
        %v553 = vpop.f32.mrf.mxu0
        %v554 = vadd.f32 %v373, %v553
        %555 = vmatmul.bf16.gmra.mxu0 %v311
        %v556 = vpop.f32.mrf.mxu0
        %v557 = vadd.f32 %v373, %v556
        %v558 = vpop.f32.mrf.mxu0
        %v559 = vadd.f32 %v373, %v558
        %560 = vmatmul.bf16.gmra.mxu0 %v313
        %v561 = vpop.f32.mrf.mxu0
        %v562 = vadd.f32 %v373, %v561
        %v563 = vpop.f32.mrf.mxu0
        %v564 = vadd.f32 %v373, %v563
        %565 = vmatmul.bf16.gmra.mxu0 %v315
        %v566 = vpop.f32.mrf.mxu0
        %v567 = vadd.f32 %v373, %v566
        %v568 = vpop.f32.mrf.mxu0
        %v569 = vadd.f32 %v373, %v568
        %570 = vmatmul.bf16.gmra.mxu0 %v317
        %v571 = vpop.f32.mrf.mxu0
        %v572 = vadd.f32 %v373, %v571
        %v573 = vpop.f32.mrf.mxu0
        %v574 = vadd.f32 %v373, %v573
        %575 = vmatmul.bf16.gmra.mxu0 %v319
        %v576 = vpop.f32.mrf.mxu0
        %v577 = vadd.f32 %v373, %v576
        %v578 = vpop.f32.mrf.mxu0
        %v579 = vadd.f32 %v373, %v578
        %580 = vmatmul.bf16.gmra.mxu0 %v321
        %v581 = vpop.f32.mrf.mxu0
        %v582 = vadd.f32 %v373, %v581
        %v583 = vpop.f32.mrf.mxu0
        %v584 = vadd.f32 %v373, %v583
        %585 = vmatmul.bf16.gmra.mxu0 %v323
        %v586 = vpop.f32.mrf.mxu0
        %v587 = vadd.f32 %v373, %v586
        %v588 = vpop.f32.mrf.mxu0
        %v589 = vadd.f32 %v373, %v588
        %590 = vmatmul.bf16.gmra.mxu0 %v325
        %v591 = vpop.f32.mrf.mxu0
        %v592 = vadd.f32 %v373, %v591
        %v593 = vpop.f32.mrf.mxu0
        %v594 = vadd.f32 %v373, %v593
        %595 = vmatmul.bf16.gmra.mxu0 %v327
        %v596 = vpop.f32.mrf.mxu0
        %v597 = vadd.f32 %v373, %v596
        %v598 = vpop.f32.mrf.mxu0
        %v599 = vadd.f32 %v373, %v598
        %600 = vmatmul.bf16.gmra.mxu0 %v329
        %v601 = vpop.f32.mrf.mxu0
        %v602 = vadd.f32 %v373, %v601
        %v603 = vpop.f32.mrf.mxu0
        %v604 = vadd.f32 %v373, %v603
        %605 = vmatmul.bf16.gmra.mxu0 %v331
        %v606 = vpop.f32.mrf.mxu0
        %v607 = vadd.f32 %v373, %v606
        %v608 = vpop.f32.mrf.mxu0
        %v609 = vadd.f32 %v373, %v608
        %610 = vmatmul.bf16.gmra.mxu0 %v333
        %v611 = vpop.f32.mrf.mxu0
        %v612 = vadd.f32 %v373, %v611
        %v613 = vpop.f32.mrf.mxu0
        %v614 = vadd.f32 %v373, %v613
        %615 = vmatmul.bf16.gmra.mxu0 %v335
        %v616 = vpop.f32.mrf.mxu0
        %v617 = vadd.f32 %v373, %v616
        %v618 = vpop.f32.mrf.mxu0
        %v619 = vadd.f32 %v373, %v618
        %620 = vmatmul.bf16.gmra.mxu0 %v337
        %v621 = vpop.f32.mrf.mxu0
        %v622 = vadd.f32 %v373, %v621
        %v623 = vpop.f32.mrf.mxu0
        %v624 = vadd.f32 %v373, %v623
        %625 = vdwg.mxu0
        %626 = vmatpush.bf16.msra.mxu0 %v503
        %627 = vmatpush.bf16.msra.mxu0 %v501
        %628 = vmatpush.bf16.msra.mxu0 %v499
        %629 = vmatpush.bf16.msra.mxu0 %v497
        %630 = vmatpush.bf16.msra.mxu0 %v495
        %631 = vmatpush.bf16.msra.mxu0 %v493
        %632 = vmatpush.bf16.msra.mxu0 %v491
        %633 = vmatpush.bf16.msra.mxu0 %v489
        %634 = vmatmul.bf16.gmra.mxu0 %v308
        %v635 = vpop.f32.mrf.mxu0
        %v636 = vadd.f32 %v547, %v635
        %v637 = vpop.f32.mrf.mxu0
        %v638 = vadd.f32 %v549, %v637
        %639 = vmatmul.bf16.gmra.mxu0 %v310
        %v640 = vpop.f32.mrf.mxu0
        %v641 = vadd.f32 %v552, %v640
        %v642 = vpop.f32.mrf.mxu0
        %v643 = vadd.f32 %v554, %v642
        %644 = vmatmul.bf16.gmra.mxu0 %v312
        %v645 = vpop.f32.mrf.mxu0
        %v646 = vadd.f32 %v557, %v645
        %v647 = vpop.f32.mrf.mxu0
        %v648 = vadd.f32 %v559, %v647
        %649 = vmatmul.bf16.gmra.mxu0 %v314
        %v650 = vpop.f32.mrf.mxu0
        %v651 = vadd.f32 %v562, %v650
        %v652 = vpop.f32.mrf.mxu0
        %v653 = vadd.f32 %v564, %v652
        %654 = vmatmul.bf16.gmra.mxu0 %v316
        %v655 = vpop.f32.mrf.mxu0
        %v656 = vadd.f32 %v567, %v655
        %v657 = vpop.f32.mrf.mxu0
        %v658 = vadd.f32 %v569, %v657
        %659 = vmatmul.bf16.gmra.mxu0 %v318
        %v660 = vpop.f32.mrf.mxu0
        %v661 = vadd.f32 %v572, %v660
        %v662 = vpop.f32.mrf.mxu0
        %v663 = vadd.f32 %v574, %v662
        %664 = vmatmul.bf16.gmra.mxu0 %v320
        %v665 = vpop.f32.mrf.mxu0
        %v666 = vadd.f32 %v577, %v665
        %v667 = vpop.f32.mrf.mxu0
        %v668 = vadd.f32 %v579, %v667
        %669 = vmatmul.bf16.gmra.mxu0 %v322
        %v670 = vpop.f32.mrf.mxu0
        %v671 = vadd.f32 %v582, %v670
        %v672 = vpop.f32.mrf.mxu0
        %v673 = vadd.f32 %v584, %v672
        %674 = vmatmul.bf16.gmra.mxu0 %v324
        %v675 = vpop.f32.mrf.mxu0
        %v676 = vadd.f32 %v587, %v675
        %v677 = vpop.f32.mrf.mxu0
        %v678 = vadd.f32 %v589, %v677
        %679 = vmatmul.bf16.gmra.mxu0 %v326
        %v680 = vpop.f32.mrf.mxu0
        %v681 = vadd.f32 %v592, %v680
        %v682 = vpop.f32.mrf.mxu0
        %v683 = vadd.f32 %v594, %v682
        %684 = vmatmul.bf16.gmra.mxu0 %v328
        %v685 = vpop.f32.mrf.mxu0
        %v686 = vadd.f32 %v597, %v685
        %v687 = vpop.f32.mrf.mxu0
        %v688 = vadd.f32 %v599, %v687
        %689 = vmatmul.bf16.gmra.mxu0 %v330
        %v690 = vpop.f32.mrf.mxu0
        %v691 = vadd.f32 %v602, %v690
        %v692 = vpop.f32.mrf.mxu0
        %v693 = vadd.f32 %v604, %v692
        %694 = vmatmul.bf16.gmra.mxu0 %v332
        %v695 = vpop.f32.mrf.mxu0
        %v696 = vadd.f32 %v607, %v695
        %v697 = vpop.f32.mrf.mxu0
        %v698 = vadd.f32 %v609, %v697
        %699 = vmatmul.bf16.gmra.mxu0 %v334
        %v700 = vpop.f32.mrf.mxu0
        %v701 = vadd.f32 %v612, %v700
        %v702 = vpop.f32.mrf.mxu0
        %v703 = vadd.f32 %v614, %v702
        %704 = vmatmul.bf16.gmra.mxu0 %v336
        %v705 = vpop.f32.mrf.mxu0
        %v706 = vadd.f32 %v617, %v705
        %v707 = vpop.f32.mrf.mxu0
        %v708 = vadd.f32 %v619, %v707
        %709 = vmatmul.bf16.gmra.mxu0 %v338
        %v710 = vpop.f32.mrf.mxu0
        %v711 = vadd.f32 %v622, %v710
        %v712 = vpop.f32.mrf.mxu0
        %v713 = vadd.f32 %v624, %v712
        %714 = vdwg.mxu0
        %715 = vmatpush.bf16.msra.mxu0 %v488
        %716 = vmatpush.bf16.msra.mxu0 %v486
        %717 = vmatpush.bf16.msra.mxu0 %v484
        %718 = vmatpush.bf16.msra.mxu0 %v482
        %719 = vmatpush.bf16.msra.mxu0 %v480
        %720 = vmatpush.bf16.msra.mxu0 %v478
        %721 = vmatpush.bf16.msra.mxu0 %v476
        %722 = vmatpush.bf16.msra.mxu0 %v474
        %723 = vmatmul.bf16.gmra.mxu0 %v307
        %v724 = vpop.f32.mrf.mxu0
        %v725 = vadd.f32 %v374, %v724
        %v726 = vpop.f32.mrf.mxu0
        %v727 = vadd.f32 %v374, %v726
        %728 = vmatmul.bf16.gmra.mxu0 %v309
        %v729 = vpop.f32.mrf.mxu0
        %v730 = vadd.f32 %v374, %v729
        %v731 = vpop.f32.mrf.mxu0
        %v732 = vadd.f32 %v374, %v731
        %733 = vmatmul.bf16.gmra.mxu0 %v311
        %v734 = vpop.f32.mrf.mxu0
        %v735 = vadd.f32 %v374, %v734
        %v736 = vpop.f32.mrf.mxu0
        %v737 = vadd.f32 %v374, %v736
        %738 = vmatmul.bf16.gmra.mxu0 %v313
        %v739 = vpop.f32.mrf.mxu0
        %v740 = vadd.f32 %v374, %v739
        %v741 = vpop.f32.mrf.mxu0
        %v742 = vadd.f32 %v374, %v741
        %743 = vmatmul.bf16.gmra.mxu0 %v315
        %v744 = vpop.f32.mrf.mxu0
        %v745 = vadd.f32 %v374, %v744
        %v746 = vpop.f32.mrf.mxu0
        %v747 = vadd.f32 %v374, %v746
        %748 = vmatmul.bf16.gmra.mxu0 %v317
        %v749 = vpop.f32.mrf.mxu0
        %v750 = vadd.f32 %v374, %v749
        %v751 = vpop.f32.mrf.mxu0
        %v752 = vadd.f32 %v374, %v751
        %753 = vmatmul.bf16.gmra.mxu0 %v319
        %v754 = vpop.f32.mrf.mxu0
        %v755 = vadd.f32 %v374, %v754
        %v756 = vpop.f32.mrf.mxu0
        %v757 = vadd.f32 %v374, %v756
        %758 = vmatmul.bf16.gmra.mxu0 %v321
        %v759 = vpop.f32.mrf.mxu0
        %v760 = vadd.f32 %v374, %v759
        %v761 = vpop.f32.mrf.mxu0
        %v762 = vadd.f32 %v374, %v761
        %763 = vmatmul.bf16.gmra.mxu0 %v323
        %v764 = vpop.f32.mrf.mxu0
        %v765 = vadd.f32 %v374, %v764
        %v766 = vpop.f32.mrf.mxu0
        %v767 = vadd.f32 %v374, %v766
        %768 = vmatmul.bf16.gmra.mxu0 %v325
        %v769 = vpop.f32.mrf.mxu0
        %v770 = vadd.f32 %v374, %v769
        %v771 = vpop.f32.mrf.mxu0
        %v772 = vadd.f32 %v374, %v771
        %773 = vmatmul.bf16.gmra.mxu0 %v327
        %v774 = vpop.f32.mrf.mxu0
        %v775 = vadd.f32 %v374, %v774
        %v776 = vpop.f32.mrf.mxu0
        %v777 = vadd.f32 %v374, %v776
        %778 = vmatmul.bf16.gmra.mxu0 %v329
        %v779 = vpop.f32.mrf.mxu0
        %v780 = vadd.f32 %v374, %v779
        %v781 = vpop.f32.mrf.mxu0
        %v782 = vadd.f32 %v374, %v781
        %783 = vmatmul.bf16.gmra.mxu0 %v331
        %v784 = vpop.f32.mrf.mxu0
        %v785 = vadd.f32 %v374, %v784
        %v786 = vpop.f32.mrf.mxu0
        %v787 = vadd.f32 %v374, %v786
        %788 = vmatmul.bf16.gmra.mxu0 %v333
        %v789 = vpop.f32.mrf.mxu0
        %v790 = vadd.f32 %v374, %v789
        %v791 = vpop.f32.mrf.mxu0
        %v792 = vadd.f32 %v374, %v791
        %793 = vmatmul.bf16.gmra.mxu0 %v335
        %v794 = vpop.f32.mrf.mxu0
        %v795 = vadd.f32 %v374, %v794
        %v796 = vpop.f32.mrf.mxu0
        %v797 = vadd.f32 %v374, %v796
        %798 = vmatmul.bf16.gmra.mxu0 %v337
        %v799 = vpop.f32.mrf.mxu0
        %v800 = vadd.f32 %v374, %v799
        %v801 = vpop.f32.mrf.mxu0
        %v802 = vadd.f32 %v374, %v801
        %803 = vdwg.mxu0
        %804 = vmatpush.bf16.msra.mxu0 %v504
        %805 = vmatpush.bf16.msra.mxu0 %v502
        %806 = vmatpush.bf16.msra.mxu0 %v500
        %807 = vmatpush.bf16.msra.mxu0 %v498
        %808 = vmatpush.bf16.msra.mxu0 %v496
        %809 = vmatpush.bf16.msra.mxu0 %v494
        %810 = vmatpush.bf16.msra.mxu0 %v492
        %811 = vmatpush.bf16.msra.mxu0 %v490
        %812 = vmatmul.bf16.gmra.mxu0 %v308
        %v813 = vpop.f32.mrf.mxu0
        %v814 = vadd.f32 %v725, %v813
        %v815 = vpop.f32.mrf.mxu0
        %v816 = vadd.f32 %v727, %v815
        %817 = vmatmul.bf16.gmra.mxu0 %v310
        %v818 = vpop.f32.mrf.mxu0
        %v819 = vadd.f32 %v730, %v818
        %v820 = vpop.f32.mrf.mxu0
        %v821 = vadd.f32 %v732, %v820
        %822 = vmatmul.bf16.gmra.mxu0 %v312
        %v823 = vpop.f32.mrf.mxu0
        %v824 = vadd.f32 %v735, %v823
        %v825 = vpop.f32.mrf.mxu0
        %v826 = vadd.f32 %v737, %v825
        %827 = vmatmul.bf16.gmra.mxu0 %v314
        %v828 = vpop.f32.mrf.mxu0
        %v829 = vadd.f32 %v740, %v828
        %v830 = vpop.f32.mrf.mxu0
        %v831 = vadd.f32 %v742, %v830
        %832 = vmatmul.bf16.gmra.mxu0 %v316
        %v833 = vpop.f32.mrf.mxu0
        %v834 = vadd.f32 %v745, %v833
        %v835 = vpop.f32.mrf.mxu0
        %v836 = vadd.f32 %v747, %v835
        %837 = vmatmul.bf16.gmra.mxu0 %v318
        %v838 = vpop.f32.mrf.mxu0
        %v839 = vadd.f32 %v750, %v838
        %v840 = vpop.f32.mrf.mxu0
        %v841 = vadd.f32 %v752, %v840
        %842 = vmatmul.bf16.gmra.mxu0 %v320
        %v843 = vpop.f32.mrf.mxu0
        %v844 = vadd.f32 %v755, %v843
        %v845 = vpop.f32.mrf.mxu0
        %v846 = vadd.f32 %v757, %v845
        %847 = vmatmul.bf16.gmra.mxu0 %v322
        %v848 = vpop.f32.mrf.mxu0
        %v849 = vadd.f32 %v760, %v848
        %v850 = vpop.f32.mrf.mxu0
        %v851 = vadd.f32 %v762, %v850
        %852 = vmatmul.bf16.gmra.mxu0 %v324
        %v853 = vpop.f32.mrf.mxu0
        %v854 = vadd.f32 %v765, %v853
        %v855 = vpop.f32.mrf.mxu0
        %v856 = vadd.f32 %v767, %v855
        %857 = vmatmul.bf16.gmra.mxu0 %v326
        %v858 = vpop.f32.mrf.mxu0
        %v859 = vadd.f32 %v770, %v858
        %v860 = vpop.f32.mrf.mxu0
        %v861 = vadd.f32 %v772, %v860
        %862 = vmatmul.bf16.gmra.mxu0 %v328
        %v863 = vpop.f32.mrf.mxu0
        %v864 = vadd.f32 %v775, %v863
        %v865 = vpop.f32.mrf.mxu0
        %v866 = vadd.f32 %v777, %v865
        %867 = vmatmul.bf16.gmra.mxu0 %v330
        %v868 = vpop.f32.mrf.mxu0
        %v869 = vadd.f32 %v780, %v868
        %v870 = vpop.f32.mrf.mxu0
        %v871 = vadd.f32 %v782, %v870
        %872 = vmatmul.bf16.gmra.mxu0 %v332
        %v873 = vpop.f32.mrf.mxu0
        %v874 = vadd.f32 %v785, %v873
        %v875 = vpop.f32.mrf.mxu0
        %v876 = vadd.f32 %v787, %v875
        %877 = vmatmul.bf16.gmra.mxu0 %v334
        %v878 = vpop.f32.mrf.mxu0
        %v879 = vadd.f32 %v790, %v878
        %v880 = vpop.f32.mrf.mxu0
        %v881 = vadd.f32 %v792, %v880
        %882 = vmatmul.bf16.gmra.mxu0 %v336
        %v883 = vpop.f32.mrf.mxu0
        %v884 = vadd.f32 %v795, %v883
        %v885 = vpop.f32.mrf.mxu0
        %v886 = vadd.f32 %v797, %v885
        %887 = vmatmul.bf16.gmra.mxu0 %v338
        %v888 = vpop.f32.mrf.mxu0
        %v889 = vadd.f32 %v800, %v888
        %v890 = vpop.f32.mrf.mxu0
        %v891 = vadd.f32 %v802, %v890
        %892 = vdwg.mxu0
        %893 = vst [vmem:[%s230] sm:$0xff] %v636
        %894 = vst [vmem:[%s230 + $0x8] sm:$0xff] %v814
        %895 = vst [vmem:[%s230 + $0x10] sm:$0xff] %v638
        %896 = vst [vmem:[%s230 + $0x18] sm:$0xff] %v816
        %897 = vst [vmem:[%s230 + $0x20] sm:$0xff] %v641
        %898 = vst [vmem:[%s230 + $0x28] sm:$0xff] %v819
        %899 = vst [vmem:[%s230 + $0x30] sm:$0xff] %v643
        %900 = vst [vmem:[%s230 + $0x38] sm:$0xff] %v821
        %901 = vst [vmem:[%s230 + $0x40] sm:$0xff] %v646
        %902 = vst [vmem:[%s230 + $0x48] sm:$0xff] %v824
        %903 = vst [vmem:[%s230 + $0x50] sm:$0xff] %v648
        %904 = vst [vmem:[%s230 + $0x58] sm:$0xff] %v826
        %905 = vst [vmem:[%s230 + $0x60] sm:$0xff] %v651
        %906 = vst [vmem:[%s230 + $0x68] sm:$0xff] %v829
        %907 = vst [vmem:[%s230 + $0x70] sm:$0xff] %v653
        %908 = vst [vmem:[%s230 + $0x78] sm:$0xff] %v831
        %909 = vst [vmem:[%s230 + $0x80] sm:$0xff] %v656
        %910 = vst [vmem:[%s230 + $0x88] sm:$0xff] %v834
        %911 = vst [vmem:[%s230 + $0x90] sm:$0xff] %v658
        %912 = vst [vmem:[%s230 + $0x98] sm:$0xff] %v836
        %913 = vst [vmem:[%s230 + $0xa0] sm:$0xff] %v661
        %914 = vst [vmem:[%s230 + $0xa8] sm:$0xff] %v839
        %915 = vst [vmem:[%s230 + $0xb0] sm:$0xff] %v663
        %916 = vst [vmem:[%s230 + $0xb8] sm:$0xff] %v841
        %917 = vst [vmem:[%s230 + $0xc0] sm:$0xff] %v666
        %918 = vst [vmem:[%s230 + $0xc8] sm:$0xff] %v844
        %919 = vst [vmem:[%s230 + $0xd0] sm:$0xff] %v668
        %920 = vst [vmem:[%s230 + $0xd8] sm:$0xff] %v846
        %921 = vst [vmem:[%s230 + $0xe0] sm:$0xff] %v671
        %922 = vst [vmem:[%s230 + $0xe8] sm:$0xff] %v849
        %923 = vst [vmem:[%s230 + $0xf0] sm:$0xff] %v673
        %924 = vst [vmem:[%s230 + $0xf8] sm:$0xff] %v851
        %925 = vst [vmem:[%s230 + $0x100] sm:$0xff] %v676
        %926 = vst [vmem:[%s230 + $0x108] sm:$0xff] %v854
        %927 = vst [vmem:[%s230 + $0x110] sm:$0xff] %v678
        %928 = vst [vmem:[%s230 + $0x118] sm:$0xff] %v856
        %929 = vst [vmem:[%s230 + $0x120] sm:$0xff] %v681
        %930 = vst [vmem:[%s230 + $0x128] sm:$0xff] %v859
        %931 = vst [vmem:[%s230 + $0x130] sm:$0xff] %v683
        %932 = vst [vmem:[%s230 + $0x138] sm:$0xff] %v861
        %933 = vst [vmem:[%s230 + $0x140] sm:$0xff] %v686
        %934 = vst [vmem:[%s230 + $0x148] sm:$0xff] %v864
        %935 = vst [vmem:[%s230 + $0x150] sm:$0xff] %v688
        %936 = vst [vmem:[%s230 + $0x158] sm:$0xff] %v866
        %937 = vst [vmem:[%s230 + $0x160] sm:$0xff] %v691
        %938 = vst [vmem:[%s230 + $0x168] sm:$0xff] %v869
        %939 = vst [vmem:[%s230 + $0x170] sm:$0xff] %v693
        %940 = vst [vmem:[%s230 + $0x178] sm:$0xff] %v871
        %941 = vst [vmem:[%s230 + $0x180] sm:$0xff] %v696
        %942 = vst [vmem:[%s230 + $0x188] sm:$0xff] %v874
        %943 = vst [vmem:[%s230 + $0x190] sm:$0xff] %v698
        %944 = vst [vmem:[%s230 + $0x198] sm:$0xff] %v876
        %945 = vst [vmem:[%s230 + $0x1a0] sm:$0xff] %v701
        %946 = vst [vmem:[%s230 + $0x1a8] sm:$0xff] %v879
        %947 = vst [vmem:[%s230 + $0x1b0] sm:$0xff] %v703
        %948 = vst [vmem:[%s230 + $0x1b8] sm:$0xff] %v881
        %949 = vst [vmem:[%s230 + $0x1c0] sm:$0xff] %v706
        %950 = vst [vmem:[%s230 + $0x1c8] sm:$0xff] %v884
        %951 = vst [vmem:[%s230 + $0x1d0] sm:$0xff] %v708
        %952 = vst [vmem:[%s230 + $0x1d8] sm:$0xff] %v886
        %953 = vst [vmem:[%s230 + $0x1e0] sm:$0xff] %v711
        %954 = vst [vmem:[%s230 + $0x1e8] sm:$0xff] %v889
        %955 = vst [vmem:[%s230 + $0x1f0] sm:$0xff] %v713
        %956 = vst [vmem:[%s230 + $0x1f8] sm:$0xff] %v891
        %s957 = sand.u32 %s97, 1
        %s958 = scalar_lea.sflag [#allocation4], %s957
        %s959 = sand.u32 %s97, 1
        %s960 = smul.addr %s959, 512
        %s961 = scalar_lea.vmem [#allocation8], %s960
        // Predicated region
        $region45: #{tpu_custom_call.1} parent=31 // pred_check
          %p962 = pneg %p107
        $region46: #{tpu_custom_call.1} parent=31 // pred_check_branch
          %964 = sbr.rel (%p962) target = $region48
        $region47: #{tpu_custom_call.1} parent=31 // pred_region
          %s965 = smul.u32 32, %s21
          %s966 = ssub.s32 38, %s965
          %p967 = scmp.lt.s32.totalorder %s966, 32
          %s968 = scalar_select %p967, %s966, 32
          %s969 = smul.u32 8, %s968
          %s970 = smul.u32 %s969, 2
          %s971 = ssub.s32 512, %s970
          %s972 = sshll.u32 %s971, 4
          %973 = vsyncadd %s958, %s972
          %p974 = scmp.ne.s32.totalorder 0, %s970
          %s975 = smul.addr %s965, 2
          %s976 = smul.addr %s975, 8
          %s977 = scalar_lea.hbm %s3, %s976
          %s978 = smul.u32 16, %s968
          %s979 = sshll.u32 %s961, 4
          %s980 = int_to_ptr.vmem [resolvable:$true] %s979
          %s981 = sshll.u32 %s977, 4
          %s982 = int_to_ptr.hbm [resolvable:$true] %s981
          %s983 = sshll.u32 %s978, 4
          %987 = dma.vmem_to_hbm [thread:$0]  (%p974), %s980, %s983, %s982, %s958, 256, 256, 16
        $region48: #{tpu_custom_call.1} parent=31 // pred_fallthru
          _
      $region32: #{tpu_custom_call.1} parent=5 // pred_fallthru
        _
      %p988 = scmp.le.s32.totalorder 2, %s16
      // Predicated region
      $region49: #{tpu_custom_call.1} parent=5 // pred_check
        %p989 = pneg %p988
      $region50: #{tpu_custom_call.1} parent=5 // pred_check_branch
        %991 = sbr.rel (%p989) target = $region52
      $region51: #{tpu_custom_call.1} parent=5 // pred_region
        %s992 = ssub.s32 %s16, 2
        // Predicated region
        $region53: #{tpu_custom_call.1} parent=51 // pred_check
          %p993 = pneg %p113
        $region54: #{tpu_custom_call.1} parent=51 // pred_check_branch
          %995 = sbr.rel (%p993) target = $region56
        $region55: #{tpu_custom_call.1} parent=51 // pred_region
          %s996 = sand.u32 %s98, 1
          %s997 = scalar_lea.sflag [#allocation4], %s996
          %s998 = sand.u32 %s98, 1
          %s999 = smul.addr %s998, 512
          %s1000 = scalar_lea.vmem [#allocation8], %s999
          %1002 = dma.done %s997, 8192
        $region56: #{tpu_custom_call.1} parent=51 // pred_fallthru
          _
      $region52: #{tpu_custom_call.1} parent=5 // pred_fallthru
        _
    $region6: #{tpu_custom_call.1} parent=1 // loop_footer
      %s20 = sadd.s32 1, %s16
    $region7: #{tpu_custom_call.1} parent=1 // loop_footer_branch
      %15 = sbr.rel target = $region3
    $region8: #{tpu_custom_call.1} parent=1 // loop_exit
      _
    %1003 = vsyncpa [#allocation3], 1
    %s1004 = scalar_lea.sflag [#allocation3], 1
    %1005 = vsyncpa %s1004, 1
    %1006 = vsyncpa [#allocation6], 1
    %1007 = vsyncpa [#allocation4], 1
    %s1008 = scalar_lea.sflag [#allocation4], 1
    %1009 = vsyncpa %s1008, 1

</llo_original>
